<compile_context>
chip_gen: v7x
topology: tpu7x:2x2x1
jax: 0.10.0
libtpu: 0.0.40
codegen_flags: <defaults>
</compile_context>

<pallas_src>
import jax
import jax.numpy as jnp
from jax.experimental import pallas as pl
from jax.experimental.pallas import tpu as pltpu

_LANE = 128
_TILE_CANDIDATES = (512, 256, 128)       # multiples of 128 (v5e MXU) / 256 (v6e, v7x MXU)
_SMALL_LIMIT_BYTES = 8 * 1024 * 1024     # whole-array-path guard; safe on v7x 32 MiB scoped VMEM


def _round_up(x, m):
    return ((x + m - 1) // m) * m


def _pick_tile(dim):
    """Largest preferred tile that evenly divides `dim` (dim is a multiple of 128)."""
    for t in _TILE_CANDIDATES:
        if dim % t == 0:
            return t
    return _LANE  # unreachable: dim is always a multiple of 128


# ---------------------------------------------------------------------------
# Kernels
# ---------------------------------------------------------------------------
def _linear_kernel_whole(x_ref, w_ref, b_ref, o_ref):
    # Whole arrays resident in VMEM: one MXU matmul + VPU bias add.
    o_ref[...] = (
        jnp.dot(x_ref[...], w_ref[...], preferred_element_type=jnp.float32)
        + b_ref[...]
    ).astype(o_ref.dtype)


def _linear_kernel_tiled(x_ref, w_ref, b_ref, o_ref):
    # grid = (M/tm, N/tn, K/tk); K is innermost ("arbitrary").  The f32 output
    # block is resident across K (its index_map ignores k), so accumulate
    # directly in o_ref: no scratch accumulator, no finalize copy (saves vst
    # pressure, esp. on v5e's single store slot).
    @pl.when(pl.program_id(2) == 0)
    def _():
        # Initialize the resident output block with the broadcast bias.
        o_ref[...] = b_ref[...] + jnp.zeros_like(o_ref)

    # bf16 MXU operands (w is stored bf16; cast the x tile in-kernel), f32 acc.
    o_ref[...] += jnp.dot(
        x_ref[...].astype(jnp.bfloat16),
        w_ref[...],
        preferred_element_type=jnp.float32,
    )


# ---------------------------------------------------------------------------
# pallas_call wrappers
# ---------------------------------------------------------------------------
def _linear_small(x, w, b):
    """Whole-array path for small shapes (everything fits in VMEM). No grid."""
    B, K = x.shape
    N = w.shape[1]
    vmem = pl.BlockSpec(memory_space=pltpu.MemorySpace.VMEM)
    return pl.pallas_call(
        _linear_kernel_whole,
        out_shape=jax.ShapeDtypeStruct((B, N), jnp.float32),
        in_specs=[vmem, vmem, vmem],
        out_specs=vmem,
        cost_estimate=pl.CostEstimate(
            flops=2 * B * K * N,
            transcendentals=0,
            bytes_accessed=4 * (B * K + K * N + N + B * N),
        ),
    )(x, w, b)


def _linear_tiled(x, w, b, *, tm, tn, tk):
    """Tiled path for large shapes: pipelined HBM<->VMEM, megacore-parallel."""
    Bp, Kp = x.shape
    Np = w.shape[1]
    return pl.pallas_call(
        _linear_kernel_tiled,
        out_shape=jax.ShapeDtypeStruct((Bp, Np), jnp.float32),
        grid_spec=pltpu.PrefetchScalarGridSpec(
            num_scalar_prefetch=0,
            grid=(Bp // tm, Np // tn, Kp // tk),
            in_specs=[
                pl.BlockSpec((tm, tk), lambda i, j, k: (i, k)),   # x (f32 in HBM)
                pl.BlockSpec((tk, tn), lambda i, j, k: (k, j)),   # w (bf16 in HBM)
                pl.BlockSpec((1, tn), lambda i, j, k: (0, j)),    # bias
            ],
            out_specs=pl.BlockSpec((tm, tn), lambda i, j, k: (i, j)),
        ),
        compiler_params=pltpu.CompilerParams(
            # Grid M/N axes shard across v7x's two TensorCores; K is a reduction.
            dimension_semantics=("parallel", "parallel", "arbitrary"),
            # 512-wide tiles double-buffered ~ 5 MiB -> well under the 32 MiB
            # scoped-VMEM default on v5e/v6e/v7x; no explicit limit needed.
        ),
    )(x, w, b)


# ---------------------------------------------------------------------------
# Module-equivalent wrapper
# ---------------------------------------------------------------------------
class PallasLinear:
    """Pallas equivalent of nn.Linear(input_size, output_size).

    Parameters are pre-processed ONCE at construction (transpose, lane
    padding, bf16 copy) so the per-call forward path contains no parameter
    reshuffling.
    """

    def __init__(self, weight, bias):
        weight = jnp.asarray(weight, jnp.float32)  # (out_f, in_f) torch layout
        bias = jnp.asarray(bias, jnp.float32)      # (out_f,)
        out_f, in_f = weight.shape
        assert bias.shape == (out_f,)
        self.in_f, self.out_f = in_f, out_f

        # Lane-dense output: pad output features up to a multiple of 128 once.
        self.out_p = _round_up(out_f, _LANE)
        n_pad = self.out_p - out_f
        wt = jnp.pad(weight.T, ((0, 0), (0, n_pad)))                       # (in_f, out_p) f32
        self.b = jnp.pad(bias.reshape(1, out_f), ((0, 0), (0, n_pad)))     # (1, out_p) f32

        # Tiled-path copy: bf16 MXU operands (also halves weight HBM bytes),
        # K padded to a multiple of 128 with zero rows (contribute exactly 0).
        self.k_pad = _round_up(in_f, _LANE)
        self.w_bf16 = jnp.pad(wt, ((0, self.k_pad - in_f), (0, 0))).astype(jnp.bfloat16)

        # Exact f32 copy only kept if the whole-array path could ever use it
        # (size-guarded), so big weights are never duplicated in HBM.
        self.w_f32 = wt if wt.size * 4 <= _SMALL_LIMIT_BYTES else None

    def __call__(self, x):
        B, in_f = x.shape
        assert in_f == self.in_f

        whole_bytes = 4 * (B * in_f + in_f * self.out_p + self.out_p + B * self.out_p)
        if self.w_f32 is not None and whole_bytes <= _SMALL_LIMIT_BYTES:
            # Small shapes: whole arrays in VMEM, no grid.  This path is
            # launch/DMA-overhead bound; exact f32 math.
            y = _linear_small(x, self.w_f32, self.b)
        else:
            # Large shapes: pad B/K per-call as needed, then pipelined tiled path.
            b_pad = _round_up(B, _LANE)
            tm = _pick_tile(b_pad)
            tn = _pick_tile(self.out_p)
            tk = _pick_tile(self.k_pad)
            # v7x megacore: make sure at least one "parallel" axis has >= 2
            # blocks so both TensorCores get work.
            if self.out_p // tn < 2:
                while tm > _LANE and b_pad // tm < 2:
                    tm //= 2
            xp = x
            if b_pad != B or self.k_pad != in_f:
                xp = jnp.pad(x, ((0, b_pad - B), (0, self.k_pad - in_f)))
            y = _linear_tiled(xp, self.w_bf16, self.b, tm=tm, tn=tn, tk=tk)[:B]

        return y if self.out_p == self.out_f else y[:, : self.out_f]


if __name__ == "__main__":
    key = jax.random.PRNGKey(0)

    def make_case(k, batch, in_f, out_f):
        kx, kw, kb = jax.random.split(k, 3)
        # Deterministic nn.Linear-style init: U(-1/sqrt(in), 1/sqrt(in)).
        bound = 1.0 / (in_f ** 0.5)
        w = jax.random.uniform(kw, (out_f, in_f), jnp.float32, -bound, bound)
        b = jax.random.uniform(kb, (out_f,), jnp.float32, -bound, bound)
        x = jax.random.normal(kx, (batch, in_f), jnp.float32)
        return x, w, b

    k1, k2, k3 = jax.random.split(key, 3)

    # 1) Tiny shape implied by the module (batch=8, input=32, output=16):
    #    whole-array VMEM path, exact f32 math.
    x, w, b = make_case(k1, 8, 32, 16)
    lr = PallasLinear(w, b)
    out = jax.block_until_ready(lr(x))
    ref = x @ w.T + b
    assert out.shape == ref.shape
    assert jnp.allclose(out, ref, atol=1e-5, rtol=1e-5)

    # 2) Tile-divisible large shape: pipelined tiled path, bf16 MXU operands
    #    (looser tolerance: operands lose mantissa, accumulation stays f32).
    x, w, b = make_case(k2, 1024, 1024, 1024)
    lr = PallasLinear(w, b)
    out = jax.block_until_ready(lr(x))
    ref = x @ w.T + b
    assert out.shape == ref.shape
    assert jnp.allclose(out, ref, atol=2e-2, rtol=2e-2)

    # 3) Large ragged shape: per-call B/K padding + tiled path + output slice.
    x, w, b = make_case(k3, 1000, 1100, 700)
    lr = PallasLinear(w, b)
    out = jax.block_until_ready(lr(x))
    ref = x @ w.T + b
    assert out.shape == ref.shape
    assert jnp.allclose(out, ref, atol=2e-2, rtol=2e-2)

    print("KERNEL_OK")
</pallas_src>

<mosaic_0001>
module attributes {stable_mosaic.version = 11 : i64} {
  func.func @_linear_kernel_whole(%arg0: memref<8x32xf32, #tpu.memory_space<vmem>>, %arg1: memref<32x128xf32, #tpu.memory_space<vmem>>, %arg2: memref<1x128xf32, #tpu.memory_space<vmem>>, %arg3: memref<8x128xf32, #tpu.memory_space<vmem>>) attributes {dimension_semantics = [], scalar_prefetch = 0 : i64, scratch_operands = 0 : i64, tpu.core_type = #tpu.core_type<tc>} {
    %c0 = arith.constant 0 : index
    %c0_0 = arith.constant 0 : index
    %0 = vector.load %arg0[%c0, %c0_0] : memref<8x32xf32, #tpu.memory_space<vmem>>, vector<8x32xf32>
    %c0_1 = arith.constant 0 : index
    %c0_2 = arith.constant 0 : index
    %1 = vector.load %arg1[%c0_1, %c0_2] : memref<32x128xf32, #tpu.memory_space<vmem>>, vector<32x128xf32>
    %cst = arith.constant dense<0.000000e+00> : vector<8x128xf32>
    %2 = tpu.matmul %0, %1, %cst {dimension_numbers = #tpu.dot_dimension_numbers<[1], [0], [0], [1], [0, 0, 1, 1], [], []>} : vector<8x32xf32>, vector<32x128xf32>, vector<8x128xf32> -> vector<8x128xf32>
    %c0_3 = arith.constant 0 : index
    %c0_4 = arith.constant 0 : index
    %3 = vector.load %arg2[%c0_3, %c0_4] : memref<1x128xf32, #tpu.memory_space<vmem>>, vector<1x128xf32>
    %4 = vector.broadcast %3 : vector<1x128xf32> to vector<8x128xf32>
    %5 = arith.addf %2, %4 : vector<8x128xf32>
    %c0_5 = arith.constant 0 : index
    %c0_6 = arith.constant 0 : index
    %6 = vector.load %arg3[%c0_5, %c0_6] : memref<8x128xf32, #tpu.memory_space<vmem>>, vector<8x128xf32>
    tpu.vector_store %arg3[%c0_5, %c0_6], %5 {strides = array<i32>} : memref<8x128xf32, #tpu.memory_space<vmem>>, vector<8x128xf32>,
    return
  }
}

</mosaic_0001>

<llo_original>
// kernel: tpu_custom_call.1
$region0: #{tpu_custom_call.1}
  #allocation0 [shape = 'u32[]', space=smem, size = 0x4, offset = 0x4, fixed_abs, tag = 'smem constant byte address 0x4 - core index']
  #allocation1 [shape = 'u32[144,128]{1,0:T(1,128)}', space=vmem, size = 0x12000, scoped, tag = 'internal scratch']
  %s0 = inlined_call_operand.hbm [shape: f32[8,32], index: 0, kind: input, shape index: {}]
  %s1 = inlined_call_operand.hbm [shape: f32[32,128], index: 1, kind: input, shape index: {}]
  %s2 = inlined_call_operand.vmem [shape: f32[1,128], index: 2, kind: input, shape index: {}]
  %s3 = inlined_call_operand.hbm [shape: f32[8,128], index: 3, kind: output, shape index: {}]
  %s4 = sld [smem:[#allocation0]]
  $region30: #{tpu_custom_call.1} parent=0
    _
  %s6 = ssub.s32 1, %s4
  %s7 = scalar_select 0, %s6, %s4
  $region1: #{tpu_custom_call.1} parent=0
    #allocation2 [shape = 'u8[4096]{0}', space=vmem, size = 0x1000, scoped, tag = 'input window, operand 0, single buffered']
    #allocation3 [shape = 's32[1]{0}', space=sflag, size = 0x4, scoped, tag = 'scoped memory for tpu_custom_call.1']
    #allocation4 [shape = 's32[1]{0}', space=sflag, size = 0x4, scoped, tag = 'scoped memory for tpu_custom_call.1']
    #allocation5 [shape = 'u8[16384]{0}', space=vmem, size = 0x4000, scoped, tag = 'input window, operand 1, single buffered']
    #allocation6 [shape = 's32[1]{0}', space=sflag, size = 0x4, scoped, tag = 'scoped memory for tpu_custom_call.1']
    #allocation7 [shape = 'u8[4096]{0}', space=vmem, size = 0x1000, scoped, tag = 'output window, operand 0, single buffered']
    %8 = vsyncpa [#allocation3], 0
    %9 = vsyncpa [#allocation6], 0
    %10 = vsyncpa [#allocation4], 0
    // Predicated region
    $region2: #{tpu_custom_call.1} parent=1 // pred_check
      _
    $region3: #{tpu_custom_call.1} parent=1 // pred_check_branch
      %12 = sbr.rel (0) target = $region5
    $region4: #{tpu_custom_call.1} parent=1 // pred_region
      %s14 = ssub.s32 128, 128
      %15 = vsyncadd [#allocation3], %s14
      %s17 = sshll.u32 [#allocation2], 4
      %s18 = int_to_ptr.vmem [resolvable:$true] %s17
      %20 = dma.hbm_to_vmem [thread:$0]  %s0, 128, %s18, [#allocation3]
    $region5: #{tpu_custom_call.1} parent=1 // pred_fallthru
      _
    // Predicated region
    $region6: #{tpu_custom_call.1} parent=1 // pred_check
      _
    $region7: #{tpu_custom_call.1} parent=1 // pred_check_branch
      %22 = sbr.rel (0) target = $region9
    $region8: #{tpu_custom_call.1} parent=1 // pred_region
      %s24 = ssub.s32 512, 512
      %25 = vsyncadd [#allocation6], %s24
      %s26 = sshll.u32 [#allocation5], 4
      %s27 = int_to_ptr.vmem [resolvable:$true] %s26
      %32 = dma.hbm_to_vmem [thread:$0]  %s1, 512, %s27, [#allocation6], 128, 128, 8
    $region9: #{tpu_custom_call.1} parent=1 // pred_fallthru
      _
    // Predicated region
    $region10: #{tpu_custom_call.1} parent=1 // pred_check
      _
    $region11: #{tpu_custom_call.1} parent=1 // pred_check_branch
      %34 = sbr.rel (0) target = $region13
    $region12: #{tpu_custom_call.1} parent=1 // pred_region
      _
    $region13: #{tpu_custom_call.1} parent=1 // pred_fallthru
      _
    // Predicated region
    $region14: #{tpu_custom_call.1} parent=1 // pred_check
      _
    $region15: #{tpu_custom_call.1} parent=1 // pred_check_branch
      %36 = sbr.rel (0) target = $region17
    $region16: #{tpu_custom_call.1} parent=1 // pred_region
      %37 = dma.done [#allocation3], 128
    $region17: #{tpu_custom_call.1} parent=1 // pred_fallthru
      _
    // Predicated region
    $region18: #{tpu_custom_call.1} parent=1 // pred_check
      _
    $region19: #{tpu_custom_call.1} parent=1 // pred_check_branch
      %39 = sbr.rel (0) target = $region21
    $region20: #{tpu_custom_call.1} parent=1 // pred_region
      %40 = dma.done [#allocation6], 512
    $region21: #{tpu_custom_call.1} parent=1 // pred_fallthru
      _
    %v41 = vld [vmem:[#allocation2] sm:$0xff]
    %v42 = vld [vmem:[#allocation5] sm:$0xff]
    %v43 = vld [vmem:[#allocation5 + $0x8] sm:$0xff]
    %v44 = vld [vmem:[#allocation5 + $0x10] sm:$0xff]
    %v45 = vld [vmem:[#allocation5 + $0x18] sm:$0xff]
    %v46 = vld [vmem:[%s2] sm:$0x1]
    %v48 = vlaneseq
    %v49 = vshrl.u32 %v48, 7
    %v50 = vsub.s32 0, %v49
    %v51 = vrot.slane %v46, %v50
    %vm53 = vcmask 261120
    %v55 = vsel %vm53, %v41, 0
    %57 = vmatprep.subr.mxu0 0.0
    %58 = vmatpush1.msra.mxu0 %v42
    %59 = vmatprep.subr.mxu0 0.0
    %60 = vmatpush1.msra.mxu0 %v43
    %61 = vmatprep.subr.mxu0 0.0
    %62 = vmatpush1.msra.mxu0 %v44
    %63 = vmatprep.subr.mxu0 0.0
    %64 = vmatpush1.msra.mxu0 %v45
    %65 = vmatprep.subr.mxu0 0.0
    %66 = vmatpush1.msra.mxu0 0.0
    %67 = vmatprep.subr.mxu0 0.0
    %68 = vmatpush1.msra.mxu0 0.0
    %69 = vmatprep.subr.mxu0 0.0
    %70 = vmatpush1.msra.mxu0 0.0
    %71 = vmatprep.subr.mxu0 0.0
    %72 = vmatpush1.msra.mxu0 0.0
    %73 = vmatprep.subr.mxu0 0.0
    %74 = vmatpush1.msra.mxu0 0.0
    %75 = vmatprep.subr.mxu0 0.0
    %76 = vmatpush1.msra.mxu0 0.0
    %77 = vmatprep.subr.mxu0 0.0
    %78 = vmatpush1.msra.mxu0 0.0
    %79 = vmatprep.subr.mxu0 0.0
    %80 = vmatpush1.msra.mxu0 0.0
    %81 = vmatprep.subr.mxu0 0.0
    %82 = vmatpush1.msra.mxu0 0.0
    %83 = vmatprep.subr.mxu0 0.0
    %84 = vmatpush1.msra.mxu0 0.0
    %85 = vmatprep.subr.mxu0 0.0
    %86 = vmatpush1.msra.mxu0 0.0
    %87 = vmatprep.subr.mxu0 0.0
    %88 = vmatpush1.msra.mxu0 0.0
    %89 = vmatprep.subr.mxu0 0.0
    %90 = vmatpush1.msra.mxu0 0.0
    %91 = vmatprep.subr.mxu0 0.0
    %92 = vmatpush1.msra.mxu0 0.0
    %93 = vmatprep.subr.mxu0 0.0
    %94 = vmatpush1.msra.mxu0 0.0
    %95 = vmatprep.subr.mxu0 0.0
    %96 = vmatpush1.msra.mxu0 0.0
    %97 = vmatprep.subr.mxu0 0.0
    %98 = vmatpush1.msra.mxu0 0.0
    %99 = vmatprep.subr.mxu0 0.0
    %100 = vmatpush1.msra.mxu0 0.0
    %101 = vmatprep.subr.mxu0 0.0
    %102 = vmatpush1.msra.mxu0 0.0
    %103 = vmatprep.subr.mxu0 0.0
    %104 = vmatpush1.msra.mxu0 0.0
    %105 = vmatprep.subr.mxu0 0.0
    %106 = vmatpush1.msra.mxu0 0.0
    %107 = vmatprep.subr.mxu0 0.0
    %108 = vmatpush1.msra.mxu0 0.0
    %109 = vmatprep.subr.mxu0 0.0
    %110 = vmatpush1.msra.mxu0 0.0
    %111 = vmatprep.subr.mxu0 0.0
    %112 = vmatpush1.msra.mxu0 0.0
    %113 = vmatprep.subr.mxu0 0.0
    %114 = vmatpush1.msra.mxu0 0.0
    %115 = vmatprep.subr.mxu0 0.0
    %116 = vmatpush1.msra.mxu0 0.0
    %117 = vmatprep.subr.mxu0 0.0
    %118 = vmatpush1.msra.mxu0 0.0
    %119 = vmatprep.subr.mxu0 0.0
    %120 = vmatpush1.msra.mxu0 0.0
    %121 = vmatprep.mubr.f32.mxu0 0.0
    %122 = vmatmul.mubr.f32.gmra.mrb[0].mxu0 %v55
    %v123 = vpop.f32.mrb[0].mxu0
    %v124 = vadd.f32 %v51, %v123
    %v125 = vpop.f32.mrb[0].mxu0
    %126 = vdwg.mxu0
    %127 = vst [vmem:[#allocation7] sm:$0xff] %v124
    // Predicated region
    $region22: #{tpu_custom_call.1} parent=1 // pred_check
      _
    $region23: #{tpu_custom_call.1} parent=1 // pred_check_branch
      %129 = sbr.rel (0) target = $region25
    $region24: #{tpu_custom_call.1} parent=1 // pred_region
      %s131 = ssub.s32 128, 128
      %132 = vsyncadd [#allocation4], %s131
      %s134 = sshll.u32 [#allocation7], 4
      %s135 = int_to_ptr.vmem [resolvable:$true] %s134
      %137 = dma.vmem_to_hbm [thread:$0]  %s135, 128, %s3, [#allocation4]
    $region25: #{tpu_custom_call.1} parent=1 // pred_fallthru
      _
    // Predicated region
    $region26: #{tpu_custom_call.1} parent=1 // pred_check
      _
    $region27: #{tpu_custom_call.1} parent=1 // pred_check_branch
      %139 = sbr.rel (0) target = $region29
    $region28: #{tpu_custom_call.1} parent=1 // pred_region
      %140 = dma.done [#allocation4], 128
    $region29: #{tpu_custom_call.1} parent=1 // pred_fallthru
      _
    %141 = vsyncpa [#allocation3], 1
    %142 = vsyncpa [#allocation6], 1
    %143 = vsyncpa [#allocation4], 1

</llo_original>
